<compile_context>
chip_gen: v6e
topology: v6e:2x2x1
jax: 0.10.0
libtpu: 0.0.40
codegen_flags: <defaults>
</compile_context>

<pallas_src>
import functools

import numpy as np
import jax
import jax.numpy as jnp
from jax.experimental import pallas as pl
from jax.experimental.pallas import tpu as pltpu


def _round_up(x, m):
    return ((x + m - 1) // m) * m


# ----------------------------- Pallas kernel ------------------------------- #
def _radon_matmul_kernel(x_ref, a_ref, o_ref):
    """o[tm, tn] += x[tm, tk] @ a[tk, tn], accumulated in the resident out tile.

    The output BlockSpec ignores the K grid axis, so o_ref stays resident in
    VMEM across the whole K loop; since o is float32 we accumulate into it
    directly (no scratch accumulator, no epilogue copy).
    """
    @pl.when(pl.program_id(2) == 0)
    def _():
        o_ref[...] = jnp.zeros_like(o_ref)

    o_ref[...] += jnp.dot(
        x_ref[...], a_ref[...], preferred_element_type=jnp.float32
    )


# ------------------------ tiling / padded-shape choice --------------------- #
def _choose_tiles(depth, n_pix, n_det):
    """Static tile sizes and padded shapes (generation-portable VMEM budget)."""
    # M (depth): cover the whole padded depth when reasonable so A^T (the
    # dominant HBM stream) is read exactly once; only tile M for very deep
    # volumes.  bf16 LHS sublane tile is 16.
    d16 = _round_up(max(int(depth), 1), 16)
    tm = d16 if d16 <= 1024 else 1024
    d_pad = _round_up(d16, tm)

    # K (pixels): large K tiles cut per-step overhead and the per-K-step f32
    # accumulator read-modify-write.  Kept tiled (<= 1024) rather than a
    # full-K resident panel so the same choice also fits v7x's 64 MiB VMEM.
    p128 = _round_up(int(n_pix), 128)
    tk = min(1024, p128)
    p_pad = _round_up(int(n_pix), tk)

    # N (angles*size): wide lane-dense tiles; when possible keep >= 2 N blocks
    # so v7x's two TensorCores both get work on the "parallel" j axis.
    n128 = _round_up(int(n_det), 128)
    tn = min(512, n128)
    if n128 // tn < 2 and n128 >= 256 and (n128 // 2) % 128 == 0:
        tn = n128 // 2
    n_pad = _round_up(int(n_det), tn)
    return tm, tk, tn, d_pad, p_pad, n_pad


def radon_project_pallas(x_pad, a_pad, *, tm, tk, tn):
    """x_pad [D_pad, P_pad] (bf16) @ a_pad [P_pad, N_pad] (bf16) -> f32 [D_pad, N_pad]."""
    d_pad, p_pad = x_pad.shape
    p_pad2, n_pad = a_pad.shape
    assert p_pad == p_pad2
    assert d_pad % tm == 0 and p_pad % tk == 0 and n_pad % tn == 0

    grid = (d_pad // tm, n_pad // tn, p_pad // tk)

    # Explicit VMEM budget: double-buffered bf16 input tiles + resident f32
    # output tile, with headroom, clamped to stay inside every generation's
    # scoped/physical VMEM (v7x: 64 MiB physical, 32 MiB scoped default).
    vmem_need = 2 * (tm * tk + tk * tn) * 2 + tm * tn * 4
    vmem_limit = int(min(max(2 * vmem_need, 32 * 1024 * 1024), 48 * 1024 * 1024))

    cost = pl.CostEstimate(
        flops=2 * d_pad * p_pad * n_pad,
        transcendentals=0,
        bytes_accessed=2 * d_pad * p_pad + 2 * p_pad * n_pad + 4 * d_pad * n_pad,
    )

    return pl.pallas_call(
        _radon_matmul_kernel,
        out_shape=jax.ShapeDtypeStruct((d_pad, n_pad), jnp.float32),
        grid_spec=pltpu.PrefetchScalarGridSpec(
            num_scalar_prefetch=0,
            grid=grid,
            in_specs=[
                pl.BlockSpec((tm, tk), lambda i, j, k: (i, k)),
                pl.BlockSpec((tk, tn), lambda i, j, k: (k, j)),
            ],
            out_specs=pl.BlockSpec((tm, tn), lambda i, j, k: (i, j)),
        ),
        compiler_params=pltpu.CompilerParams(
            dimension_semantics=("parallel", "parallel", "arbitrary"),
            vmem_limit_bytes=vmem_limit,
        ),
        cost_estimate=cost,
    )(x_pad, a_pad)


def _radon_forward(img, a_pad, *, depth, size, num_angles,
                   d_pad, p_pad, tm, tk, tn):
    """Jitted forward: cast/pad img, run the Pallas matmul, slice/reshape."""
    n_det = num_angles * size
    x = img.reshape(depth, size * size).astype(jnp.bfloat16)
    x = jnp.pad(x, ((0, d_pad - depth), (0, p_pad - size * size)))
    out = radon_project_pallas(x, a_pad, tm=tm, tk=tk, tn=tn)
    return out[:depth, :n_det].reshape(depth, num_angles, size)


# --------------------------- host-side projector --------------------------- #
def build_system_matrix(size, angles):
    """Pixel-driven parallel-beam projection matrix (host-side, numpy).

    Returns A^T of shape [size*size, num_angles*size] (float32) so that
      sino_flat = img_flat @ A^T.
    Physical volume size 1 -> pixel width w = 1/size; detector size 1 with
    `size` bins -> detector pixel width w.  Built per-angle (no [A, S, P]
    intermediate).
    """
    angles = np.asarray(angles, np.float64)
    A = angles.shape[0]
    S = int(size)
    P = S * S
    w = 1.0 / S

    idx = np.arange(S, dtype=np.float64)
    xs = (idx - (S - 1) / 2.0) * w                         # column centers (x right)
    ys = ((S - 1) / 2.0 - idx) * w                         # row centers (y up)
    X = np.broadcast_to(xs[None, :], (S, S)).reshape(-1)   # [P]
    Y = np.broadcast_to(ys[:, None], (S, S)).reshape(-1)   # [P]
    pix = np.arange(P)

    At = np.zeros((P, A * S), dtype=np.float32)            # [P, A*S]
    for a in range(A):
        Ma = np.zeros((S, P), dtype=np.float64)
        t = X * np.cos(angles[a]) + Y * np.sin(angles[a])  # detector coordinate
        pos = t / w + (S - 1) / 2.0                        # fractional bin index
        k0 = np.floor(pos).astype(np.int64)
        frac = pos - k0
        v0 = (k0 >= 0) & (k0 < S)
        v1 = (k0 + 1 >= 0) & (k0 + 1 < S)
        np.add.at(Ma, (k0[v0], pix[v0]), (1.0 - frac[v0]) * w)
        np.add.at(Ma, (k0[v1] + 1, pix[v1]), frac[v1] * w)
        At[:, a * S:(a + 1) * S] = Ma.T.astype(np.float32)
    return At


class Radon3DPallas:
    """JAX/Pallas equivalent of Radon3D.forward (3D parallel-beam Radon)."""

    def __init__(self, depth, size=16, angle=None):
        if angle is None:
            angle = 8
        if np.isscalar(angle):
            angle = np.linspace(0.0, np.pi, int(angle), endpoint=False)
        self.depth = int(depth)
        self.img_size = int(size)
        self.angle = np.asarray(angle, dtype=np.float32)
        self.num_angles = int(self.angle.shape[0])

        n_pix = self.img_size * self.img_size
        n_det = self.num_angles * self.img_size

        # One-time "parameter" setup: projector matrix (transposed), padded to
        # the tile grid and cast to bf16 once, kept device-resident.
        self.sys_matrix_t = build_system_matrix(self.img_size, self.angle)  # [P, A*S] f32
        tm, tk, tn, d_pad, p_pad, n_pad = _choose_tiles(self.depth, n_pix, n_det)
        a_host = np.zeros((p_pad, n_pad), dtype=np.float32)
        a_host[:n_pix, :n_det] = self.sys_matrix_t
        self._a_pad = jnp.asarray(a_host, dtype=jnp.bfloat16)               # [P_pad, N_pad] bf16

        self._jit_forward = jax.jit(
            functools.partial(
                _radon_forward,
                depth=self.depth, size=self.img_size, num_angles=self.num_angles,
                d_pad=d_pad, p_pad=p_pad, tm=tm, tk=tk, tn=tn,
            )
        )

    def forward(self, img):
        """img: [depth, size, size]  ->  sino: [depth, num_angles, size] (f32)."""
        img = jnp.asarray(img, jnp.float32)
        assert img.shape == (self.depth, self.img_size, self.img_size)
        return self._jit_forward(img, self._a_pad)

    __call__ = forward


# ---------------------------------- main ----------------------------------- #
if __name__ == "__main__":
    def _reference_bf16(img, sys_matrix_t):
        # Same numerics as the kernel: bf16 operands, f32 accumulation.
        D = img.shape[0]
        x = jnp.asarray(img, jnp.float32).reshape(D, -1).astype(jnp.bfloat16)
        a = jnp.asarray(sys_matrix_t, jnp.float32).astype(jnp.bfloat16)
        return jnp.dot(x, a, preferred_element_type=jnp.float32)

    def _reference_f64(img, sys_matrix_t):
        # Full-precision projector reference (documents bf16 operand error).
        D = img.shape[0]
        x = np.asarray(img, np.float64).reshape(D, -1)
        a = np.asarray(sys_matrix_t, np.float64)
        return (x @ a).astype(np.float32)

    key = jax.random.PRNGKey(0)
    k0, k1 = jax.random.split(key)

    # Case 1 (toy config): single grid step.
    depth, size = 4, 16
    angles = np.linspace(0.0, np.pi, 8, endpoint=False)
    img = jax.random.normal(k0, (depth, size, size), dtype=jnp.float32)
    radon = Radon3DPallas(depth=depth, size=size, angle=angles)
    sino = jax.block_until_ready(radon(img))
    assert sino.shape == (depth, len(angles), size)
    ref = _reference_bf16(img, radon.sys_matrix_t).reshape(depth, len(angles), size)
    np.testing.assert_allclose(np.asarray(sino), np.asarray(ref), rtol=5e-4, atol=5e-4)
    ref64 = _reference_f64(img, radon.sys_matrix_t).reshape(depth, len(angles), size)
    # bf16 operand quantization (~2^-9 relative per term) bounds the drift:
    np.testing.assert_allclose(np.asarray(sino), ref64, rtol=5e-2, atol=3e-2)

    # Case 2: exercises multi-tile grid along N (2 blocks) and K (3 blocks).
    depth2, size2 = 24, 48
    angles2 = np.linspace(0.0, np.pi, 20, endpoint=False)
    img2 = jax.random.normal(k1, (depth2, size2, size2), dtype=jnp.float32)
    radon2 = Radon3DPallas(depth=depth2, size=size2, angle=angles2)
    sino2 = jax.block_until_ready(radon2(img2))
    assert sino2.shape == (depth2, len(angles2), size2)
    ref2 = _reference_bf16(img2, radon2.sys_matrix_t).reshape(depth2, len(angles2), size2)
    np.testing.assert_allclose(np.asarray(sino2), np.asarray(ref2), rtol=1e-3, atol=1e-3)
    ref2_64 = _reference_f64(img2, radon2.sys_matrix_t).reshape(depth2, len(angles2), size2)
    np.testing.assert_allclose(np.asarray(sino2), ref2_64, rtol=5e-2, atol=3e-2)

    print("KERNEL_OK")
</pallas_src>

<mosaic_0001>
module attributes {stable_mosaic.version = 11 : i64} {
  func.func @_radon_matmul_kernel(%arg0: i32, %arg1: i32, %arg2: i32, %arg3: memref<16x256xbf16, #tpu.memory_space<vmem>>, %arg4: memref<256x128xbf16, #tpu.memory_space<vmem>>, %arg5: memref<16x128xf32, #tpu.memory_space<vmem>>) attributes {dimension_semantics = [#tpu.dimension_semantics<parallel>, #tpu.dimension_semantics<parallel>, #tpu.dimension_semantics<arbitrary>], iteration_bounds = array<i64: 1, 1, 1>, scalar_prefetch = 0 : i64, scratch_operands = 0 : i64, tpu.core_type = #tpu.core_type<tc>, window_params = [{transform_indices = @transform_0, window_bounds = array<i64: 16, 256>}, {transform_indices = @transform_1, window_bounds = array<i64: 256, 128>}, {transform_indices = @transform_2, window_bounds = array<i64: 16, 128>}]} {
    %c0_i32 = arith.constant 0 : i32
    %0 = arith.cmpi eq, %arg2, %c0_i32 : i32
    %1 = arith.extui %0 : i1 to i32
    %c0_i32_0 = arith.constant 0 : i32
    %2 = arith.cmpi ne, %1, %c0_i32_0 : i32
    scf.if %2 {
      %cst_8 = arith.constant 0.000000e+00 : f32
      %9 = vector.broadcast %cst_8 : f32 to vector<16x128xf32>
      %c0_9 = arith.constant 0 : index
      %c0_10 = arith.constant 0 : index
      %10 = vector.load %arg5[%c0_9, %c0_10] : memref<16x128xf32, #tpu.memory_space<vmem>>, vector<16x128xf32>
      tpu.vector_store %arg5[%c0_9, %c0_10], %9 {strides = array<i32>} : memref<16x128xf32, #tpu.memory_space<vmem>>, vector<16x128xf32>,
    } else {
    }
    %c0 = arith.constant 0 : index
    %c0_1 = arith.constant 0 : index
    %3 = vector.load %arg5[%c0, %c0_1] : memref<16x128xf32, #tpu.memory_space<vmem>>, vector<16x128xf32>
    %c0_2 = arith.constant 0 : index
    %c0_3 = arith.constant 0 : index
    %4 = vector.load %arg3[%c0_2, %c0_3] : memref<16x256xbf16, #tpu.memory_space<vmem>>, vector<16x256xbf16>
    %c0_4 = arith.constant 0 : index
    %c0_5 = arith.constant 0 : index
    %5 = vector.load %arg4[%c0_4, %c0_5] : memref<256x128xbf16, #tpu.memory_space<vmem>>, vector<256x128xbf16>
    %cst = arith.constant dense<0.000000e+00> : vector<16x128xf32>
    %6 = tpu.matmul %4, %5, %cst {dimension_numbers = #tpu.dot_dimension_numbers<[1], [0], [0], [1], [0, 0, 1, 1], [], []>} : vector<16x256xbf16>, vector<256x128xbf16>, vector<16x128xf32> -> vector<16x128xf32>
    %7 = arith.addf %3, %6 : vector<16x128xf32>
    %c0_6 = arith.constant 0 : index
    %c0_7 = arith.constant 0 : index
    %8 = vector.load %arg5[%c0_6, %c0_7] : memref<16x128xf32, #tpu.memory_space<vmem>>, vector<16x128xf32>
    tpu.vector_store %arg5[%c0_6, %c0_7], %7 {strides = array<i32>} : memref<16x128xf32, #tpu.memory_space<vmem>>, vector<16x128xf32>,
    return
  }
  func.func @transform_0(%arg0: i32, %arg1: i32, %arg2: i32) -> (i32, i32) {
    %c0_i32 = arith.constant 0 : i32
    return %arg0, %arg2 : i32, i32
  }
  func.func @transform_1(%arg0: i32, %arg1: i32, %arg2: i32) -> (i32, i32) {
    %c0_i32 = arith.constant 0 : i32
    return %arg2, %arg1 : i32, i32
  }
  func.func @transform_2(%arg0: i32, %arg1: i32, %arg2: i32) -> (i32, i32) {
    %c0_i32 = arith.constant 0 : i32
    return %arg0, %arg1 : i32, i32
  }
}

</mosaic_0001>

<llo_original>
// kernel: _radon_forward.1
$region0: #{_radon_forward.1}
  #allocation0 [shape = 'u32[]', space=smem, size = 0x4, offset = 0x4, fixed_abs, tag = 'smem constant byte address 0x4 - core index']
  #allocation1 [shape = 'u32[144,128]{1,0:T(1,128)}', space=vmem, size = 0x12000, scoped, tag = 'internal scratch']
  %s0 = inlined_call_operand.vmem [shape: bf16[16,256], index: 0, kind: input, shape index: {}]
  %s1 = inlined_call_operand.vmem [shape: bf16[256,128], index: 1, kind: input, shape index: {}]
  %s2 = inlined_call_operand.vmem [shape: f32[16,128], index: 2, kind: output, shape index: {}]
  %s3 = sld [smem:[#allocation0]]
  $region22: #{_radon_forward.1} parent=0
    _
  %s5 = ssub.s32 1, %s3
  %s6 = scalar_select 0, %s5, %s3
  // Predicated region
  $region2: #{_radon_forward.1} parent=0 // pred_check
    _
  $region3: #{_radon_forward.1} parent=0 // pred_check_branch
    %8 = sbr.rel (0) target = $region5
  $region4: #{_radon_forward.1} parent=0 // pred_region
    _
  $region5: #{_radon_forward.1} parent=0 // pred_fallthru
    _
  // Predicated region
  $region6: #{_radon_forward.1} parent=0 // pred_check
    _
  $region7: #{_radon_forward.1} parent=0 // pred_check_branch
    %10 = sbr.rel (0) target = $region9
  $region8: #{_radon_forward.1} parent=0 // pred_region
    _
  $region9: #{_radon_forward.1} parent=0 // pred_fallthru
    _
  %p12 = scmp.eq.s32.totalorder 0, 0
  // Predicated region
  $region10: #{_radon_forward.1} parent=0 // pred_check
    %p13 = pneg %p12
  $region11: #{_radon_forward.1} parent=0 // pred_check_branch
    %15 = sbr.rel (%p13) target = $region13
  $region12: #{_radon_forward.1} parent=0 // pred_region
    %16 = vst [vmem:[%s2] sm:$0xff] 0.0
    %17 = vst [vmem:[%s2 + $0x8] sm:$0xff] 0.0
  $region13: #{_radon_forward.1} parent=0 // pred_fallthru
    _
  %v18 = vld [vmem:[%s2] sm:$0xff]
  %v19 = vld [vmem:[%s2 + $0x8] sm:$0xff]
  %v20 = vld [vmem:[%s0] sm:$0xff]
  %v21 = vld [vmem:[%s0 + $0x8] sm:$0xff]
  %v22 = vld [vmem:[%s1] sm:$0xf]
  %v23 = vld [vmem:[%s1 + $0x4] sm:$0xf]
  %v24 = vld [vmem:[%s1 + $0x8] sm:$0xf]
  %v25 = vld [vmem:[%s1 + $0xc] sm:$0xf]
  %v26 = vld [vmem:[%s1 + $0x10] sm:$0xf]
  %v27 = vld [vmem:[%s1 + $0x14] sm:$0xf]
  %v28 = vld [vmem:[%s1 + $0x18] sm:$0xf]
  %v29 = vld [vmem:[%s1 + $0x1c] sm:$0xf]
  %v30 = vld [vmem:[%s1 + $0x20] sm:$0xf]
  %v31 = vld [vmem:[%s1 + $0x24] sm:$0xf]
  %v32 = vld [vmem:[%s1 + $0x28] sm:$0xf]
  %v33 = vld [vmem:[%s1 + $0x2c] sm:$0xf]
  %v34 = vld [vmem:[%s1 + $0x30] sm:$0xf]
  %v35 = vld [vmem:[%s1 + $0x34] sm:$0xf]
  %v36 = vld [vmem:[%s1 + $0x38] sm:$0xf]
  %v37 = vld [vmem:[%s1 + $0x3c] sm:$0xf]
  %v38 = vld [vmem:[%s1 + $0x40] sm:$0xf]
  %v39 = vld [vmem:[%s1 + $0x44] sm:$0xf]
  %v40 = vld [vmem:[%s1 + $0x48] sm:$0xf]
  %v41 = vld [vmem:[%s1 + $0x4c] sm:$0xf]
  %v42 = vld [vmem:[%s1 + $0x50] sm:$0xf]
  %v43 = vld [vmem:[%s1 + $0x54] sm:$0xf]
  %v44 = vld [vmem:[%s1 + $0x58] sm:$0xf]
  %v45 = vld [vmem:[%s1 + $0x5c] sm:$0xf]
  %v46 = vld [vmem:[%s1 + $0x60] sm:$0xf]
  %v47 = vld [vmem:[%s1 + $0x64] sm:$0xf]
  %v48 = vld [vmem:[%s1 + $0x68] sm:$0xf]
  %v49 = vld [vmem:[%s1 + $0x6c] sm:$0xf]
  %v50 = vld [vmem:[%s1 + $0x70] sm:$0xf]
  %v51 = vld [vmem:[%s1 + $0x74] sm:$0xf]
  %v52 = vld [vmem:[%s1 + $0x78] sm:$0xf]
  %v53 = vld [vmem:[%s1 + $0x7c] sm:$0xf]
  %v56 = vunpack.c.l.b16 %v20
  %v57 = vunpack.c.h.b16 %v20
  %v58 = vunpack.c.l.b16 %v21
  %v59 = vunpack.c.h.b16 %v21
  %v60 = vpack.c.b16 %v58, %v56
  %v61 = vpack.c.b16 %v59, %v57
  %v96 = vunpack.c.l.b16 %v22
  %v97 = vunpack.c.l.b16 %v23
  %v98 = vunpack.c.l.b16 %v24
  %v99 = vunpack.c.l.b16 %v25
  %v100 = vunpack.c.l.b16 %v26
  %v101 = vunpack.c.l.b16 %v27
  %v102 = vunpack.c.l.b16 %v28
  %v103 = vunpack.c.l.b16 %v29
  %v104 = vunpack.c.l.b16 %v30
  %v105 = vunpack.c.l.b16 %v31
  %v106 = vunpack.c.l.b16 %v32
  %v107 = vunpack.c.l.b16 %v33
  %v108 = vunpack.c.l.b16 %v34
  %v109 = vunpack.c.l.b16 %v35
  %v110 = vunpack.c.l.b16 %v36
  %v111 = vunpack.c.l.b16 %v37
  %v112 = vunpack.c.l.b16 %v38
  %v113 = vunpack.c.l.b16 %v39
  %v114 = vunpack.c.l.b16 %v40
  %v115 = vunpack.c.l.b16 %v41
  %v116 = vunpack.c.l.b16 %v42
  %v117 = vunpack.c.l.b16 %v43
  %v118 = vunpack.c.l.b16 %v44
  %v119 = vunpack.c.l.b16 %v45
  %v120 = vunpack.c.l.b16 %v46
  %v121 = vunpack.c.l.b16 %v47
  %v122 = vunpack.c.l.b16 %v48
  %v123 = vunpack.c.l.b16 %v49
  %v124 = vunpack.c.l.b16 %v50
  %v125 = vunpack.c.l.b16 %v51
  %v126 = vunpack.c.l.b16 %v52
  %v127 = vunpack.c.l.b16 %v53
  %v128 = vpack.c.b16 %v97, %v96
  %v129 = vpack.c.b16 %v99, %v98
  %v130 = vpack.c.b16 %v101, %v100
  %v131 = vpack.c.b16 %v103, %v102
  %v132 = vpack.c.b16 %v105, %v104
  %v133 = vpack.c.b16 %v107, %v106
  %v134 = vpack.c.b16 %v109, %v108
  %v135 = vpack.c.b16 %v111, %v110
  %v136 = vpack.c.b16 %v113, %v112
  %v137 = vpack.c.b16 %v115, %v114
  %v138 = vpack.c.b16 %v117, %v116
  %v139 = vpack.c.b16 %v119, %v118
  %v140 = vpack.c.b16 %v121, %v120
  %v141 = vpack.c.b16 %v123, %v122
  %v142 = vpack.c.b16 %v125, %v124
  %v143 = vpack.c.b16 %v127, %v126
  %160 = vmatprep.subr.bf16.mxu0 0
  %161 = vmatpush1.bf16.msra.mxu0 %v135
  %162 = vmatprep.subr.bf16.mxu0 0
  %163 = vmatpush1.bf16.msra.mxu0 %v134
  %164 = vmatprep.subr.bf16.mxu0 0
  %165 = vmatpush1.bf16.msra.mxu0 %v133
  %166 = vmatprep.subr.bf16.mxu0 0
  %167 = vmatpush1.bf16.msra.mxu0 %v132
  %168 = vmatprep.subr.bf16.mxu0 0
  %169 = vmatpush1.bf16.msra.mxu0 %v131
  %170 = vmatprep.subr.bf16.mxu0 0
  %171 = vmatpush1.bf16.msra.mxu0 %v130
  %172 = vmatprep.subr.bf16.mxu0 0
  %173 = vmatpush1.bf16.msra.mxu0 %v129
  %174 = vmatprep.subr.bf16.mxu0 0
  %175 = vmatpush1.bf16.msra.mxu0 %v128
  %176 = vmatprep.subr.bf16.mxu0 0
  %177 = vmatpush2.bf16.msra.mxu0 %v143
  %178 = vmatprep.subr.bf16.mxu0 0
  %179 = vmatpush2.bf16.msra.mxu0 %v142
  %180 = vmatprep.subr.bf16.mxu0 0
  %181 = vmatpush2.bf16.msra.mxu0 %v141
  %182 = vmatprep.subr.bf16.mxu0 0
  %183 = vmatpush2.bf16.msra.mxu0 %v140
  %184 = vmatprep.subr.bf16.mxu0 0
  %185 = vmatpush2.bf16.msra.mxu0 %v139
  %186 = vmatprep.subr.bf16.mxu0 0
  %187 = vmatpush2.bf16.msra.mxu0 %v138
  %188 = vmatprep.subr.bf16.mxu0 0
  %189 = vmatpush2.bf16.msra.mxu0 %v137
  %190 = vmatprep.subr.bf16.mxu0 0
  %191 = vmatpush2.bf16.msra.mxu0 %v136
  %192 = vmatprep.mubr.bf16.mxu0 %v61
  %193 = vmatmul.mubr.bf16.gmra.mxu0 %v60
  %v194 = vpop.f32.mrf.mxu0
  %v195 = vadd.f32 0.0, %v194
  %v196 = vpop.f32.mrf.mxu0
  %v197 = vpop.f32.mrf.mxu0
  %v198 = vadd.f32 0.0, %v197
  %v199 = vpop.f32.mrf.mxu0
  %200 = vdwg.mxu0
  %v201 = vadd.f32 %v18, %v195
  %v202 = vadd.f32 %v19, %v198
  %203 = vst [vmem:[%s2] sm:$0xff] %v201
  %204 = vst [vmem:[%s2 + $0x8] sm:$0xff] %v202
  // Predicated region
  $region14: #{_radon_forward.1} parent=0 // pred_check
    _
  $region15: #{_radon_forward.1} parent=0 // pred_check_branch
    %206 = sbr.rel (0) target = $region17
  $region16: #{_radon_forward.1} parent=0 // pred_region
    _
  $region17: #{_radon_forward.1} parent=0 // pred_fallthru
    _
  // Predicated region
  $region18: #{_radon_forward.1} parent=0 // pred_check
    _
  $region19: #{_radon_forward.1} parent=0 // pred_check_branch
    %208 = sbr.rel (0) target = $region21
  $region20: #{_radon_forward.1} parent=0 // pred_region
    _
  $region21: #{_radon_forward.1} parent=0 // pred_fallthru
    _

</llo_original>
